<compile_context>
chip_gen: v7x
topology: tpu7x:2x2x1
jax: 0.10.0
libtpu: 0.0.40
codegen_flags: <defaults>
</compile_context>

<pallas_src>
import jax
import jax.numpy as jnp
from jax.experimental import pallas as pl
from jax.experimental.pallas import tpu as pltpu


def _flash_self_attention_kernel(
        xq_ref, xk_ref, wqt_ref, wkt_ref, wvt_ref, bq_ref, bk_ref, bv_ref,
        o_ref, q_scr, m_scr, l_scr, acc_scr):
    # xq_ref: (TB, TQ, D)  rows used for queries
    # xk_ref: (TB, TK, D)  rows used for keys / values
    # wqt/wkt/wvt: (D, D)  bf16, pre-transposed (scale folded into wqt)
    # bq/bk/bv:   (1, D)   f32   (scale folded into bq)
    # o_ref:  (TB, TQ, D)
    # scratch: q (bf16), running max m, running sum l, f32 accumulator acc
    ki = pl.program_id(2)
    tb, tq, d = xq_ref.shape
    tk = xk_ref.shape[1]

    @pl.when(ki == 0)
    def _init():
        # Project the query tile once per (batch-chunk, q-tile); it stays in
        # a bf16 scratch across all key tiles.
        xq = xq_ref[...].astype(jnp.bfloat16).reshape(tb * tq, d)
        q = jnp.dot(xq, wqt_ref[...], preferred_element_type=jnp.float32)
        q = q + bq_ref[...]
        q_scr[...] = q.reshape(tb, tq, d).astype(jnp.bfloat16)
        m_scr[...] = jnp.full_like(m_scr, -jnp.inf)
        l_scr[...] = jnp.zeros_like(l_scr)
        acc_scr[...] = jnp.zeros_like(acc_scr)

    # Project K and V for this key tile (bf16 MXU operands, f32 accumulate).
    xk = xk_ref[...].astype(jnp.bfloat16).reshape(tb * tk, d)
    k = (jnp.dot(xk, wkt_ref[...], preferred_element_type=jnp.float32)
         + bk_ref[...]).astype(jnp.bfloat16).reshape(tb, tk, d)
    v = (jnp.dot(xk, wvt_ref[...], preferred_element_type=jnp.float32)
         + bv_ref[...]).astype(jnp.bfloat16).reshape(tb, tk, d)

    # score tile (scale already folded into the query projection).
    s = jnp.einsum("bqd,bkd->bqk", q_scr[...], k,
                   preferred_element_type=jnp.float32)          # (TB, TQ, TK) f32

    # Online-softmax update (all statistics in f32).
    m_prev = m_scr[...]
    m_new = jnp.maximum(m_prev, jnp.max(s, axis=-1, keepdims=True))
    alpha = jnp.exp(m_prev - m_new)
    p = jnp.exp(s - m_new)
    l_scr[...] = alpha * l_scr[...] + jnp.sum(p, axis=-1, keepdims=True)
    acc_scr[...] = alpha * acc_scr[...] + jnp.einsum(
        "bqk,bkd->bqd", p.astype(jnp.bfloat16), v,
        preferred_element_type=jnp.float32)
    m_scr[...] = m_new

    @pl.when(ki == pl.num_programs(2) - 1)
    def _finalize():
        inv_l = pl.reciprocal(l_scr[...], approx=True)          # EUP vrcp
        o_ref[...] = (acc_scr[...] * inv_l).astype(o_ref.dtype)


def _vmem_estimate_bytes(tb, tq, tk, d):
    """Rough live-set estimate: pipelined blocks + scratch + intermediates."""
    f32, bf16 = 4, 2
    blocks = 2 * (tb * tq * d * f32        # xq block (double buffered)
                  + tb * tk * d * f32      # xk block
                  + tb * tq * d * f32)     # out block
    weights = 3 * d * d * bf16 + 3 * d * f32
    scratch = (tb * tq * d * bf16          # q
               + 2 * tb * tq * f32         # m, l
               + tb * tq * d * f32)        # acc
    interm = (2 * tb * tq * tk * f32       # s, exp(s)
              + tb * tq * tk * bf16        # p cast for the MXU
              + 2 * tb * tk * d * bf16)    # k, v
    return blocks + weights + scratch + interm


def _pick_tile(n, target):
    """Largest divisor of n that is <= target and a multiple of 8 (or n)."""
    if n <= target:
        return n
    for t in range(target, 0, -1):
        if n % t == 0 and t % 8 == 0:
            return t
    return n  # e.g. prime n: fall back to full extent (correct, not tiled)


def _pick_tiles(B, N, D, *, tq_target=256, tk_target=512,
                vmem_budget=12 * 1024 * 1024):
    # Score-tile plan sized for the tightest generation (v7x, 64 MiB VMEM):
    # TQ=256 / TK=512 keeps the f32 s/p working set ~1 MiB per batch element.
    tq = _pick_tile(N, tq_target)
    tk = _pick_tile(N, tk_target)
    # Grow the batch tile while the working set stays inside the budget
    # (amortizes the ~0.35 us per-grid-step overhead for small N).
    # NOTE: TB must divide B; for prime/odd B this falls back to TB=1.
    tb = 1
    for cand in range(1, B + 1):
        if B % cand == 0 and _vmem_estimate_bytes(cand, tq, tk, D) <= vmem_budget:
            tb = cand
    # v7x has 2 TensorCores: keep >= 2 "parallel" grid steps when B >= 2.
    if B >= 2 and (B // tb) * (N // tq) < 2:
        for cand in range(tb, 0, -1):
            if B % cand == 0 and cand <= B // 2:
                tb = cand
                break
    return tb, tq, tk


def self_attention(x, wq, bq, wk, bk, wv, bv, *, tq_target=256, tk_target=512):
    """x: (B, N, D); wq/wk/wv: (D, D) PyTorch Linear weights; bq/bk/bv: (D,)."""
    B, N, D = x.shape
    scale = 1.0 / (float(D) ** 0.5)

    # Pre-transpose the nn.Linear weights (y = x @ W^T + b) and fold the
    # 1/sqrt(D) score scale into the query projection (free in the wrapper).
    # MXU operands go to bf16; biases stay f32 (added to the f32 accumulator).
    wqt = (wq.T * scale).astype(jnp.bfloat16)
    wkt = wk.T.astype(jnp.bfloat16)
    wvt = wv.T.astype(jnp.bfloat16)
    bq2 = (bq * scale).reshape(1, D).astype(jnp.float32)
    bk2 = bk.reshape(1, D).astype(jnp.float32)
    bv2 = bv.reshape(1, D).astype(jnp.float32)

    TB, TQ, TK = _pick_tiles(B, N, D, tq_target=tq_target, tk_target=tk_target)
    grid = (B // TB, N // TQ, N // TK)

    est = _vmem_estimate_bytes(TB, TQ, TK, D)
    vmem_limit = int(min(max(4 * est, 32 * 1024 * 1024), 48 * 1024 * 1024))

    grid_spec = pltpu.PrefetchScalarGridSpec(
        num_scalar_prefetch=0,
        grid=grid,
        in_specs=[
            # x rows for queries (block index constant across ki -> no re-DMA)
            pl.BlockSpec((TB, TQ, D), lambda b, qi, ki: (b, qi, 0)),
            # x rows for keys/values
            # TODO(synk): sweep pipeline_mode=pl.Buffered(3) here if profiles
            # show exposed DMA at key-tile boundaries for HBM-bound shapes.
            pl.BlockSpec((TB, TK, D), lambda b, qi, ki: (b, ki, 0)),
            pl.BlockSpec((D, D), lambda b, qi, ki: (0, 0)),   # Wq^T * scale
            pl.BlockSpec((D, D), lambda b, qi, ki: (0, 0)),   # Wk^T
            pl.BlockSpec((D, D), lambda b, qi, ki: (0, 0)),   # Wv^T
            pl.BlockSpec((1, D), lambda b, qi, ki: (0, 0)),   # bq * scale
            pl.BlockSpec((1, D), lambda b, qi, ki: (0, 0)),   # bk
            pl.BlockSpec((1, D), lambda b, qi, ki: (0, 0)),   # bv
        ],
        out_specs=pl.BlockSpec((TB, TQ, D), lambda b, qi, ki: (b, qi, 0)),
        scratch_shapes=[
            pltpu.VMEM((TB, TQ, D), jnp.bfloat16),   # projected, scaled q
            pltpu.VMEM((TB, TQ, 1), jnp.float32),    # running max
            pltpu.VMEM((TB, TQ, 1), jnp.float32),    # running sum
            pltpu.VMEM((TB, TQ, D), jnp.float32),    # output accumulator
        ],
    )

    return pl.pallas_call(
        _flash_self_attention_kernel,
        out_shape=jax.ShapeDtypeStruct((B, N, D), x.dtype),
        grid_spec=grid_spec,
        compiler_params=pltpu.CompilerParams(
            dimension_semantics=("parallel", "parallel", "arbitrary"),
            vmem_limit_bytes=vmem_limit),
    )(x, x, wqt, wkt, wvt, bq2, bk2, bv2)


def self_attention_ref(x, wq, bq, wk, bk, wv, bv):
    q = jnp.einsum("bnd,od->bno", x, wq) + bq
    k = jnp.einsum("bnd,od->bno", x, wk) + bk
    v = jnp.einsum("bnd,od->bno", x, wv) + bv
    s = jnp.einsum("bqd,bkd->bqk", q, k) / jnp.sqrt(jnp.float32(x.shape[-1]))
    p = jax.nn.softmax(s, axis=-1)
    return jnp.einsum("bqk,bkd->bqd", p, v)


if __name__ == "__main__":
    def check(B, N, D, *, tq_target=256, tk_target=512, seed=0):
        key = jax.random.PRNGKey(seed)
        kx, kwq, kbq, kwk, kbk, kwv, kbv = jax.random.split(key, 7)
        x = jax.random.normal(kx, (B, N, D), dtype=jnp.float32)
        # nn.Linear(input_dim, input_dim): weight (D, D), bias (D,)
        wq = jax.random.normal(kwq, (D, D), dtype=jnp.float32) * 0.1
        bq = jax.random.normal(kbq, (D,), dtype=jnp.float32) * 0.1
        wk = jax.random.normal(kwk, (D, D), dtype=jnp.float32) * 0.1
        bk = jax.random.normal(kbk, (D,), dtype=jnp.float32) * 0.1
        wv = jax.random.normal(kwv, (D, D), dtype=jnp.float32) * 0.1
        bv = jax.random.normal(kbv, (D,), dtype=jnp.float32) * 0.1

        out = self_attention(x, wq, bq, wk, bk, wv, bv,
                             tq_target=tq_target, tk_target=tk_target)
        out = jax.block_until_ready(out)
        ref = self_attention_ref(x, wq, bq, wk, bk, wv, bv)
        assert out.shape == (B, N, D)
        err = float(jnp.max(jnp.abs(out - ref)))
        # bf16 MXU operands (with f32 accumulation / f32 softmax statistics)
        # plus the approximate EUP reciprocal give ~1e-3..5e-3 abs error.
        assert jnp.allclose(out, ref, atol=2e-2, rtol=2e-2), err

    # Small shape implied by the module (PointNet-style (batch, points, C)).
    check(2, 8, 32)
    # Exercise the flash accumulation over multiple query/key tiles.
    check(2, 32, 32, tq_target=8, tk_target=8, seed=1)

    print("KERNEL_OK")
</pallas_src>

<mosaic_0001>
module attributes {stable_mosaic.version = 11 : i64} {
  func.func @_flash_self_attention_kernel(%arg0: i32, %arg1: i32, %arg2: i32, %arg3: memref<1x8x32xf32, #tpu.memory_space<vmem>>, %arg4: memref<1x8x32xf32, #tpu.memory_space<vmem>>, %arg5: memref<32x32xbf16, #tpu.memory_space<vmem>>, %arg6: memref<32x32xbf16, #tpu.memory_space<vmem>>, %arg7: memref<32x32xbf16, #tpu.memory_space<vmem>>, %arg8: memref<1x32xf32, #tpu.memory_space<vmem>>, %arg9: memref<1x32xf32, #tpu.memory_space<vmem>>, %arg10: memref<1x32xf32, #tpu.memory_space<vmem>>, %arg11: memref<1x8x32xf32, #tpu.memory_space<vmem>>, %arg12: memref<1x8x32xbf16, #tpu.memory_space<vmem>>, %arg13: memref<1x8x1xf32, #tpu.memory_space<vmem>>, %arg14: memref<1x8x1xf32, #tpu.memory_space<vmem>>, %arg15: memref<1x8x32xf32, #tpu.memory_space<vmem>>) attributes {dimension_semantics = [#tpu.dimension_semantics<parallel>, #tpu.dimension_semantics<parallel>, #tpu.dimension_semantics<arbitrary>], iteration_bounds = array<i64: 2, 1, 1>, scalar_prefetch = 0 : i64, scratch_operands = 4 : i64, tpu.core_type = #tpu.core_type<tc>, window_params = [{transform_indices = @transform_0, window_bounds = array<i64: 1, 8, 32>}, {transform_indices = @transform_1, window_bounds = array<i64: 1, 8, 32>}, {pipeline_mode = #tpu.pipeline_mode<synchronous>, transform_indices = @transform_2, window_bounds = array<i64: 32, 32>}, {pipeline_mode = #tpu.pipeline_mode<synchronous>, transform_indices = @transform_3, window_bounds = array<i64: 32, 32>}, {pipeline_mode = #tpu.pipeline_mode<synchronous>, transform_indices = @transform_4, window_bounds = array<i64: 32, 32>}, {pipeline_mode = #tpu.pipeline_mode<synchronous>, transform_indices = @transform_5, window_bounds = array<i64: 1, 32>}, {pipeline_mode = #tpu.pipeline_mode<synchronous>, transform_indices = @transform_6, window_bounds = array<i64: 1, 32>}, {pipeline_mode = #tpu.pipeline_mode<synchronous>, transform_indices = @transform_7, window_bounds = array<i64: 1, 32>}, {transform_indices = @transform_8, window_bounds = array<i64: 1, 8, 32>}]} {
    %c0_i32 = arith.constant 0 : i32
    %0 = arith.cmpi eq, %arg2, %c0_i32 : i32
    %1 = arith.extui %0 : i1 to i32
    %c0_i32_0 = arith.constant 0 : i32
    %2 = arith.cmpi ne, %1, %c0_i32_0 : i32
    scf.if %2 {
      %c0_39 = arith.constant 0 : index
      %c0_40 = arith.constant 0 : index
      %c0_41 = arith.constant 0 : index
      %48 = vector.load %arg3[%c0_39, %c0_40, %c0_41] : memref<1x8x32xf32, #tpu.memory_space<vmem>>, vector<1x8x32xf32>
      %49 = arith.truncf %48 : vector<1x8x32xf32> to vector<1x8x32xbf16>
      %50 = vector.shape_cast %49 : vector<1x8x32xbf16> to vector<8x32xbf16>
      %c0_42 = arith.constant 0 : index
      %c0_43 = arith.constant 0 : index
      %51 = vector.load %arg5[%c0_42, %c0_43] : memref<32x32xbf16, #tpu.memory_space<vmem>>, vector<32x32xbf16>
      %cst_44 = arith.constant dense<0.000000e+00> : vector<8x32xf32>
      %52 = tpu.matmul %50, %51, %cst_44 {dimension_numbers = #tpu.dot_dimension_numbers<[1], [0], [0], [1], [0, 0, 1, 1], [], []>} : vector<8x32xbf16>, vector<32x32xbf16>, vector<8x32xf32> -> vector<8x32xf32>
      %c0_45 = arith.constant 0 : index
      %c0_46 = arith.constant 0 : index
      %53 = vector.load %arg8[%c0_45, %c0_46] : memref<1x32xf32, #tpu.memory_space<vmem>>, vector<1x32xf32>
      %54 = vector.broadcast %53 : vector<1x32xf32> to vector<8x32xf32>
      %55 = arith.addf %52, %54 : vector<8x32xf32>
      %56 = vector.shape_cast %55 : vector<8x32xf32> to vector<1x8x32xf32>
      %57 = arith.truncf %56 : vector<1x8x32xf32> to vector<1x8x32xbf16>
      %c0_47 = arith.constant 0 : index
      %c0_48 = arith.constant 0 : index
      %c0_49 = arith.constant 0 : index
      %58 = vector.load %arg12[%c0_47, %c0_48, %c0_49] : memref<1x8x32xbf16, #tpu.memory_space<vmem>>, vector<1x8x32xbf16>
      tpu.vector_store %arg12[%c0_47, %c0_48, %c0_49], %57 {strides = array<i32>} : memref<1x8x32xbf16, #tpu.memory_space<vmem>>, vector<1x8x32xbf16>,
      %cst_50 = arith.constant 0xFF800000 : f32
      %59 = vector.broadcast %cst_50 : f32 to vector<1x8x1xf32>
      %c0_51 = arith.constant 0 : index
      %c0_52 = arith.constant 0 : index
      %c0_53 = arith.constant 0 : index
      %60 = vector.load %arg13[%c0_51, %c0_52, %c0_53] : memref<1x8x1xf32, #tpu.memory_space<vmem>>, vector<1x8x1xf32>
      tpu.vector_store %arg13[%c0_51, %c0_52, %c0_53], %59 {strides = array<i32>} : memref<1x8x1xf32, #tpu.memory_space<vmem>>, vector<1x8x1xf32>,
      %cst_54 = arith.constant 0.000000e+00 : f32
      %61 = vector.broadcast %cst_54 : f32 to vector<1x8x1xf32>
      %c0_55 = arith.constant 0 : index
      %c0_56 = arith.constant 0 : index
      %c0_57 = arith.constant 0 : index
      %62 = vector.load %arg14[%c0_55, %c0_56, %c0_57] : memref<1x8x1xf32, #tpu.memory_space<vmem>>, vector<1x8x1xf32>
      tpu.vector_store %arg14[%c0_55, %c0_56, %c0_57], %61 {strides = array<i32>} : memref<1x8x1xf32, #tpu.memory_space<vmem>>, vector<1x8x1xf32>,
      %cst_58 = arith.constant 0.000000e+00 : f32
      %63 = vector.broadcast %cst_58 : f32 to vector<1x8x32xf32>
      %c0_59 = arith.constant 0 : index
      %c0_60 = arith.constant 0 : index
      %c0_61 = arith.constant 0 : index
      %64 = vector.load %arg15[%c0_59, %c0_60, %c0_61] : memref<1x8x32xf32, #tpu.memory_space<vmem>>, vector<1x8x32xf32>
      tpu.vector_store %arg15[%c0_59, %c0_60, %c0_61], %63 {strides = array<i32>} : memref<1x8x32xf32, #tpu.memory_space<vmem>>, vector<1x8x32xf32>,
    } else {
    }
    %c0 = arith.constant 0 : index
    %c0_1 = arith.constant 0 : index
    %c0_2 = arith.constant 0 : index
    %3 = vector.load %arg4[%c0, %c0_1, %c0_2] : memref<1x8x32xf32, #tpu.memory_space<vmem>>, vector<1x8x32xf32>
    %4 = arith.truncf %3 : vector<1x8x32xf32> to vector<1x8x32xbf16>
    %5 = vector.shape_cast %4 : vector<1x8x32xbf16> to vector<8x32xbf16>
    %c0_3 = arith.constant 0 : index
    %c0_4 = arith.constant 0 : index
    %6 = vector.load %arg6[%c0_3, %c0_4] : memref<32x32xbf16, #tpu.memory_space<vmem>>, vector<32x32xbf16>
    %cst = arith.constant dense<0.000000e+00> : vector<8x32xf32>
    %7 = tpu.matmul %5, %6, %cst {dimension_numbers = #tpu.dot_dimension_numbers<[1], [0], [0], [1], [0, 0, 1, 1], [], []>} : vector<8x32xbf16>, vector<32x32xbf16>, vector<8x32xf32> -> vector<8x32xf32>
    %c0_5 = arith.constant 0 : index
    %c0_6 = arith.constant 0 : index
    %8 = vector.load %arg9[%c0_5, %c0_6] : memref<1x32xf32, #tpu.memory_space<vmem>>, vector<1x32xf32>
    %9 = vector.broadcast %8 : vector<1x32xf32> to vector<8x32xf32>
    %10 = arith.addf %7, %9 : vector<8x32xf32>
    %11 = arith.truncf %10 : vector<8x32xf32> to vector<8x32xbf16>
    %12 = vector.shape_cast %11 : vector<8x32xbf16> to vector<1x8x32xbf16>
    %c0_7 = arith.constant 0 : index
    %c0_8 = arith.constant 0 : index
    %13 = vector.load %arg7[%c0_7, %c0_8] : memref<32x32xbf16, #tpu.memory_space<vmem>>, vector<32x32xbf16>
    %cst_9 = arith.constant dense<0.000000e+00> : vector<8x32xf32>
    %14 = tpu.matmul %5, %13, %cst_9 {dimension_numbers = #tpu.dot_dimension_numbers<[1], [0], [0], [1], [0, 0, 1, 1], [], []>} : vector<8x32xbf16>, vector<32x32xbf16>, vector<8x32xf32> -> vector<8x32xf32>
    %c0_10 = arith.constant 0 : index
    %c0_11 = arith.constant 0 : index
    %15 = vector.load %arg10[%c0_10, %c0_11] : memref<1x32xf32, #tpu.memory_space<vmem>>, vector<1x32xf32>
    %16 = vector.broadcast %15 : vector<1x32xf32> to vector<8x32xf32>
    %17 = arith.addf %14, %16 : vector<8x32xf32>
    %18 = arith.truncf %17 : vector<8x32xf32> to vector<8x32xbf16>
    %19 = vector.shape_cast %18 : vector<8x32xbf16> to vector<1x8x32xbf16>
    %c0_12 = arith.constant 0 : index
    %c0_13 = arith.constant 0 : index
    %c0_14 = arith.constant 0 : index
    %20 = vector.load %arg12[%c0_12, %c0_13, %c0_14] : memref<1x8x32xbf16, #tpu.memory_space<vmem>>, vector<1x8x32xbf16>
    "tpu.trace_start"() <{level = 10 : i32, message = "bqd,bkd->bqk"}> : () -> ()
    %cst_15 = arith.constant dense<0.000000e+00> : vector<1x8x8xf32>
    %21 = tpu.matmul %20, %12, %cst_15 {dimension_numbers = #tpu.dot_dimension_numbers<[2], [2], [1], [1], [0, 0, 0, 1, 1, 1], [0], [0]>} : vector<1x8x32xbf16>, vector<1x8x32xbf16>, vector<1x8x8xf32> -> vector<1x8x8xf32>
    "tpu.trace_stop"() : () -> ()
    %c0_16 = arith.constant 0 : index
    %c0_17 = arith.constant 0 : index
    %c0_18 = arith.constant 0 : index
    %22 = vector.load %arg13[%c0_16, %c0_17, %c0_18] : memref<1x8x1xf32, #tpu.memory_space<vmem>>, vector<1x8x1xf32>
    %cst_19 = arith.constant dense<0xFF800000> : vector<1x8xf32>
    %23 = vector.multi_reduction <maximumf>, %21, %cst_19 [2] : vector<1x8x8xf32> to vector<1x8xf32>
    %24 = vector.shape_cast %23 : vector<1x8xf32> to vector<1x8x1xf32>
    %25 = arith.maximumf %22, %24 : vector<1x8x1xf32>
    %26 = arith.subf %22, %25 : vector<1x8x1xf32>
    %27 = math.exp %26 : vector<1x8x1xf32>
    %28 = vector.broadcast %25 : vector<1x8x1xf32> to vector<1x8x8xf32>
    %29 = arith.subf %21, %28 : vector<1x8x8xf32>
    %30 = math.exp %29 : vector<1x8x8xf32>
    %c0_20 = arith.constant 0 : index
    %c0_21 = arith.constant 0 : index
    %c0_22 = arith.constant 0 : index
    %31 = vector.load %arg14[%c0_20, %c0_21, %c0_22] : memref<1x8x1xf32, #tpu.memory_space<vmem>>, vector<1x8x1xf32>
    %32 = arith.mulf %27, %31 : vector<1x8x1xf32>
    %cst_23 = arith.constant dense<0.000000e+00> : vector<1x8xf32>
    %33 = vector.multi_reduction <add>, %30, %cst_23 [2] : vector<1x8x8xf32> to vector<1x8xf32>
    %34 = vector.shape_cast %33 : vector<1x8xf32> to vector<1x8x1xf32>
    %35 = arith.addf %32, %34 : vector<1x8x1xf32>
    %c0_24 = arith.constant 0 : index
    %c0_25 = arith.constant 0 : index
    %c0_26 = arith.constant 0 : index
    %36 = vector.load %arg14[%c0_24, %c0_25, %c0_26] : memref<1x8x1xf32, #tpu.memory_space<vmem>>, vector<1x8x1xf32>
    tpu.vector_store %arg14[%c0_24, %c0_25, %c0_26], %35 {strides = array<i32>} : memref<1x8x1xf32, #tpu.memory_space<vmem>>, vector<1x8x1xf32>,
    %c0_27 = arith.constant 0 : index
    %c0_28 = arith.constant 0 : index
    %c0_29 = arith.constant 0 : index
    %37 = vector.load %arg15[%c0_27, %c0_28, %c0_29] : memref<1x8x32xf32, #tpu.memory_space<vmem>>, vector<1x8x32xf32>
    %38 = vector.broadcast %27 : vector<1x8x1xf32> to vector<1x8x32xf32>
    %39 = arith.mulf %38, %37 : vector<1x8x32xf32>
    %40 = arith.truncf %30 : vector<1x8x8xf32> to vector<1x8x8xbf16>
    "tpu.trace_start"() <{level = 10 : i32, message = "bqk,bkd->bqd"}> : () -> ()
    %cst_30 = arith.constant dense<0.000000e+00> : vector<1x8x32xf32>
    %41 = tpu.matmul %40, %19, %cst_30 {dimension_numbers = #tpu.dot_dimension_numbers<[2], [1], [1], [2], [0, 0, 0, 1, 1, 2], [0], [0]>} : vector<1x8x8xbf16>, vector<1x8x32xbf16>, vector<1x8x32xf32> -> vector<1x8x32xf32>
    "tpu.trace_stop"() : () -> ()
    %42 = arith.addf %39, %41 : vector<1x8x32xf32>
    %c0_31 = arith.constant 0 : index
    %c0_32 = arith.constant 0 : index
    %c0_33 = arith.constant 0 : index
    %43 = vector.load %arg15[%c0_31, %c0_32, %c0_33] : memref<1x8x32xf32, #tpu.memory_space<vmem>>, vector<1x8x32xf32>
    tpu.vector_store %arg15[%c0_31, %c0_32, %c0_33], %42 {strides = array<i32>} : memref<1x8x32xf32, #tpu.memory_space<vmem>>, vector<1x8x32xf32>,
    %c0_34 = arith.constant 0 : index
    %c0_35 = arith.constant 0 : index
    %c0_36 = arith.constant 0 : index
    %44 = vector.load %arg13[%c0_34, %c0_35, %c0_36] : memref<1x8x1xf32, #tpu.memory_space<vmem>>, vector<1x8x1xf32>
    tpu.vector_store %arg13[%c0_34, %c0_35, %c0_36], %25 {strides = array<i32>} : memref<1x8x1xf32, #tpu.memory_space<vmem>>, vector<1x8x1xf32>,
    %c0_i32_37 = arith.constant 0 : i32
    %45 = arith.cmpi eq, %arg2, %c0_i32_37 : i32
    %46 = arith.extui %45 : i1 to i32
    %c0_i32_38 = arith.constant 0 : i32
    %47 = arith.cmpi ne, %46, %c0_i32_38 : i32
    scf.if %47 {
      %c0_39 = arith.constant 0 : index
      %c0_40 = arith.constant 0 : index
      %c0_41 = arith.constant 0 : index
      %48 = vector.load %arg14[%c0_39, %c0_40, %c0_41] : memref<1x8x1xf32, #tpu.memory_space<vmem>>, vector<1x8x1xf32>
      %49 = tpu.reciprocal %48 {approx = true} : vector<1x8x1xf32> -> vector<1x8x1xf32>
      %c0_42 = arith.constant 0 : index
      %c0_43 = arith.constant 0 : index
      %c0_44 = arith.constant 0 : index
      %50 = vector.load %arg15[%c0_42, %c0_43, %c0_44] : memref<1x8x32xf32, #tpu.memory_space<vmem>>, vector<1x8x32xf32>
      %51 = vector.broadcast %49 : vector<1x8x1xf32> to vector<1x8x32xf32>
      %52 = arith.mulf %50, %51 : vector<1x8x32xf32>
      %c0_45 = arith.constant 0 : index
      %c0_46 = arith.constant 0 : index
      %c0_47 = arith.constant 0 : index
      %53 = vector.load %arg11[%c0_45, %c0_46, %c0_47] : memref<1x8x32xf32, #tpu.memory_space<vmem>>, vector<1x8x32xf32>
      tpu.vector_store %arg11[%c0_45, %c0_46, %c0_47], %52 {strides = array<i32>} : memref<1x8x32xf32, #tpu.memory_space<vmem>>, vector<1x8x32xf32>,
    } else {
    }
    return
  }
  func.func @transform_0(%arg0: i32, %arg1: i32, %arg2: i32) -> (i32, i32, i32) {
    %c0_i32 = arith.constant 0 : i32
    %c0_i32_0 = arith.constant 0 : i32
    return %arg0, %arg1, %c0_i32 : i32, i32, i32
  }
  func.func @transform_1(%arg0: i32, %arg1: i32, %arg2: i32) -> (i32, i32, i32) {
    %c0_i32 = arith.constant 0 : i32
    %c0_i32_0 = arith.constant 0 : i32
    return %arg0, %arg2, %c0_i32 : i32, i32, i32
  }
  func.func @transform_2(%arg0: i32, %arg1: i32, %arg2: i32) -> (i32, i32) {
    %c0_i32 = arith.constant 0 : i32
    %c0_i32_0 = arith.constant 0 : i32
    %c0_i32_1 = arith.constant 0 : i32
    return %c0_i32, %c0_i32_0 : i32, i32
  }
  func.func @transform_3(%arg0: i32, %arg1: i32, %arg2: i32) -> (i32, i32) {
    %c0_i32 = arith.constant 0 : i32
    %c0_i32_0 = arith.constant 0 : i32
    %c0_i32_1 = arith.constant 0 : i32
    return %c0_i32, %c0_i32_0 : i32, i32
  }
  func.func @transform_4(%arg0: i32, %arg1: i32, %arg2: i32) -> (i32, i32) {
    %c0_i32 = arith.constant 0 : i32
    %c0_i32_0 = arith.constant 0 : i32
    %c0_i32_1 = arith.constant 0 : i32
    return %c0_i32, %c0_i32_0 : i32, i32
  }
  func.func @transform_5(%arg0: i32, %arg1: i32, %arg2: i32) -> (i32, i32) {
    %c0_i32 = arith.constant 0 : i32
    %c0_i32_0 = arith.constant 0 : i32
    %c0_i32_1 = arith.constant 0 : i32
    return %c0_i32, %c0_i32_0 : i32, i32
  }
  func.func @transform_6(%arg0: i32, %arg1: i32, %arg2: i32) -> (i32, i32) {
    %c0_i32 = arith.constant 0 : i32
    %c0_i32_0 = arith.constant 0 : i32
    %c0_i32_1 = arith.constant 0 : i32
    return %c0_i32, %c0_i32_0 : i32, i32
  }
  func.func @transform_7(%arg0: i32, %arg1: i32, %arg2: i32) -> (i32, i32) {
    %c0_i32 = arith.constant 0 : i32
    %c0_i32_0 = arith.constant 0 : i32
    %c0_i32_1 = arith.constant 0 : i32
    return %c0_i32, %c0_i32_0 : i32, i32
  }
  func.func @transform_8(%arg0: i32, %arg1: i32, %arg2: i32) -> (i32, i32, i32) {
    %c0_i32 = arith.constant 0 : i32
    %c0_i32_0 = arith.constant 0 : i32
    return %arg0, %arg1, %c0_i32 : i32, i32, i32
  }
}

</mosaic_0001>

<llo_original>
// kernel: tpu_custom_call.1
$region0: #{tpu_custom_call.1}
  #allocation0 [shape = 'u32[]', space=smem, size = 0x4, offset = 0x4, fixed_abs, tag = 'smem constant byte address 0x4 - core index']
  #allocation1 [shape = 'u32[144,128]{1,0:T(1,128)}', space=vmem, size = 0x12000, scoped, tag = 'internal scratch']
  #allocation2 [shape = 'bf16[1,8,32]{2,1,0:T(8,128)(2,1)}', space=vmem, size = 0x800, scoped, tag = 'scratch operand']
  #allocation3 [shape = 'f32[1,8,1]{2,1,0:T(8,128)}', space=vmem, size = 0x1000, scoped, tag = 'scratch operand']
  #allocation4 [shape = 'f32[1,8,1]{2,1,0:T(8,128)}', space=vmem, size = 0x1000, scoped, tag = 'scratch operand']
  #allocation5 [shape = 'f32[1,8,32]{2,1,0:T(8,128)}', space=vmem, size = 0x1000, scoped, tag = 'scratch operand']
  %s0 = inlined_call_operand.hbm [shape: f32[2,8,32], index: 0, kind: input, shape index: {}]
  %s1 = inlined_call_operand.hbm [shape: f32[2,8,32], index: 1, kind: input, shape index: {}]
  %s2 = inlined_call_operand.hbm [shape: bf16[32,32], index: 2, kind: input, shape index: {}]
  %s3 = inlined_call_operand.hbm [shape: bf16[32,32], index: 3, kind: input, shape index: {}]
  %s4 = inlined_call_operand.hbm [shape: bf16[32,32], index: 4, kind: input, shape index: {}]
  %s5 = inlined_call_operand.vmem [shape: f32[1,32], index: 5, kind: input, shape index: {}]
  %s6 = inlined_call_operand.vmem [shape: f32[1,32], index: 6, kind: input, shape index: {}]
  %s7 = inlined_call_operand.vmem [shape: f32[1,32], index: 7, kind: input, shape index: {}]
  %s8 = inlined_call_operand.hbm [shape: f32[2,8,32], index: 8, kind: output, shape index: {}]
  %s9 = sld [smem:[#allocation0]]
  $region93: #{tpu_custom_call.1} parent=0
    _
  %s11 = ssub.s32 1, %s9
  %s12 = scalar_select 0, %s11, %s9
  $region1: #{tpu_custom_call.1} parent=0
    #allocation6 [shape = 'u8[8192]{0}', space=vmem, size = 0x2000, scoped, tag = 'input window, operand 0']
    #allocation7 [shape = 's32[2]{0}', space=sflag, size = 0x8, scoped, tag = 'scoped memory for tpu_custom_call.1']
    #allocation8 [shape = 's32[2]{0}', space=sflag, size = 0x8, scoped, tag = 'scoped memory for tpu_custom_call.1']
    #allocation9 [shape = 'u8[8192]{0}', space=vmem, size = 0x2000, scoped, tag = 'input window, operand 1']
    #allocation10 [shape = 's32[2]{0}', space=sflag, size = 0x8, scoped, tag = 'scoped memory for tpu_custom_call.1']
    #allocation11 [shape = 'u8[8192]{0}', space=vmem, size = 0x2000, scoped, tag = 'input window, operand 2, single buffered']
    #allocation12 [shape = 'u8[8192]{0}', space=vmem, size = 0x2000, scoped, tag = 'input window, operand 3, single buffered']
    #allocation13 [shape = 's32[1]{0}', space=sflag, size = 0x4, scoped, tag = 'scoped memory for tpu_custom_call.1']
    #allocation14 [shape = 'u8[8192]{0}', space=vmem, size = 0x2000, scoped, tag = 'input window, operand 4, single buffered']
    #allocation15 [shape = 'u8[8192]{0}', space=vmem, size = 0x2000, scoped, tag = 'output window, operand 0']
    %13 = vsyncpa [#allocation7], 0
    %s14 = scalar_lea.sflag [#allocation7], 1
    %15 = vsyncpa %s14, 0
    %16 = vsyncpa [#allocation10], 0
    %s17 = scalar_lea.sflag [#allocation10], 1
    %18 = vsyncpa %s17, 0
    %19 = vsyncpa [#allocation13], 0
    %20 = vsyncpa [#allocation8], 0
    %s21 = scalar_lea.sflag [#allocation8], 1
    %22 = vsyncpa %s21, 0
    loop: start=0, step=1, limit=4
    $region2: #{tpu_custom_call.1} parent=1 // loop_pre_header
      _
    $region3: #{tpu_custom_call.1} parent=1 // loop_header
      %s24 = sphi 0, %s28
      %p25 = scmp.ge.s32.totalorder %s24, 4
      %s31 = sphi 0, %s50
      %s32 = sphi 0, %s46
      %s33 = sphi 0, %s42
      %s34 = sphi 0, %s31
      %s35 = sphi 0, %s32
      %s36 = sphi 0, %s33
      %s37 = sphi 0, %s34
      %s38 = sphi 0, %s35
      %s39 = sphi 0, %s36
      %s55 = sphi 0, %s57
      %s58 = sphi 0, %s55
      %s59 = sphi 0, %s58
      %s75 = sphi 0, %s59
      %s83 = sphi 0, %s85
      %s86 = sphi 0, %s83
      %s87 = sphi 0, %s86
      %s103 = sphi 0, %s87
      %s107 = sphi 0, %s107
      %s109 = sphi 0, %s107
      %s110 = sphi 0, %s109
      %s124 = sphi 0, %s110
      %s128 = sphi 0, %s128
      %s130 = sphi 0, %s128
      %s131 = sphi 0, %s130
      %s145 = sphi 0, %s131
      %s149 = sphi 0, %s149
      %s151 = sphi 0, %s149
      %s152 = sphi 0, %s151
      %s166 = sphi 0, %s152
      %s170 = sphi 0, %s170
      %s172 = sphi 0, %s170
      %s173 = sphi 0, %s172
      %s187 = sphi 0, %s173
      %s191 = sphi 0, %s191
      %s193 = sphi 0, %s191
      %s194 = sphi 0, %s193
      %s208 = sphi 0, %s194
      %s212 = sphi 0, %s212
      %s214 = sphi 0, %s212
      %s215 = sphi 0, %s214
      %s229 = sphi 0, %s215
      %s237 = sphi 0, %s239
      %s240 = sphi 0, %s237
      %s241 = sphi 0, %s240
      %s257 = sphi 0, %s241
    $region4: #{tpu_custom_call.1} parent=1 // loop_header_branch
      %27 = sbr.rel (%p25) target = $region8
    $region5: #{tpu_custom_call.1} parent=1 // loop_body
      %s29 = ssub.s32 %s24, 1
      %s30 = ssub.s32 %s24, 2
      %s40 = sadd.s32 1, %s33
      %p41 = scmp.ge.s32.totalorder %s40, 1
      %s42 = scalar_select %p41, 0, %s40
      %s43 = sadd.s32 1, %s32
      %s44 = scalar_select %p41, %s43, %s32
      %p45 = scmp.ge.s32.totalorder %s44, 1
      %s46 = scalar_select %p45, 0, %s44
      %s47 = sadd.s32 1, %s31
      %s48 = scalar_select %p45, %s47, %s31
      %p49 = scmp.ge.s32.totalorder %s48, 2
      %s50 = scalar_select %p49, 0, %s48
      %s51 = ssub.s32 %s31, %s50
      %s52 = ssub.s32 %s32, %s46
      %s53 = sor.u32 %s51, %s52
      %p54 = scmp.eq.s32.totalorder %s53, 0
      %s56 = sadd.s32 %s55, 1
      %s57 = scalar_select %p54, %s55, %s56
      %p60 = pneg %p54
      %p61 = scmp.eq.s32.totalorder %s24, 1
      %p62 = por %p60, %p61
      %p63 = scmp.ne.s32.totalorder %s55, %s58
      %p64 = scmp.eq.s32.totalorder %s24, 0
      %p65 = por %p63, %p64
      %p66 = scmp.ne.s32.totalorder %s55, %s58
      %p67 = scmp.eq.s32.totalorder %s29, 1
      %p68 = por %p66, %p67
      %p69 = scmp.ne.s32.totalorder %s58, %s59
      %p70 = scmp.eq.s32.totalorder %s29, 0
      %p71 = por %p69, %p70
      %p72 = scmp.ne.s32.totalorder %s58, %s59
      %p73 = scmp.eq.s32.totalorder %s30, 1
      %p74 = por %p72, %p73
      %p76 = scmp.ne.s32.totalorder %s59, %s75
      %p77 = scmp.eq.s32.totalorder %s30, 0
      %p78 = por %p76, %p77
      %s79 = ssub.s32 %s31, %s50
      %s80 = ssub.s32 %s33, %s42
      %s81 = sor.u32 %s79, %s80
      %p82 = scmp.eq.s32.totalorder %s81, 0
      %s84 = sadd.s32 %s83, 1
      %s85 = scalar_select %p82, %s83, %s84
      %p88 = pneg %p82
      %p89 = scmp.eq.s32.totalorder %s24, 1
      %p90 = por %p88, %p89
      %p91 = scmp.ne.s32.totalorder %s83, %s86
      %p92 = scmp.eq.s32.totalorder %s24, 0
      %p93 = por %p91, %p92
      %p94 = scmp.ne.s32.totalorder %s83, %s86
      %p95 = scmp.eq.s32.totalorder %s29, 1
      %p96 = por %p94, %p95
      %p97 = scmp.ne.s32.totalorder %s86, %s87
      %p98 = scmp.eq.s32.totalorder %s29, 0
      %p99 = por %p97, %p98
      %p100 = scmp.ne.s32.totalorder %s86, %s87
      %p101 = scmp.eq.s32.totalorder %s30, 1
      %p102 = por %p100, %p101
      %p104 = scmp.ne.s32.totalorder %s87, %s103
      %p105 = scmp.eq.s32.totalorder %s30, 0
      %p106 = por %p104, %p105
      %s108 = sadd.s32 %s107, 1
      %p111 = scmp.eq.s32.totalorder %s24, 1
      %p112 = scmp.ne.s32.totalorder %s107, %s109
      %p113 = scmp.eq.s32.totalorder %s24, 0
      %p114 = por %p112, %p113
      %p115 = scmp.ne.s32.totalorder %s107, %s109
      %p116 = scmp.eq.s32.totalorder %s29, 1
      %p117 = por %p115, %p116
      %p118 = scmp.ne.s32.totalorder %s109, %s110
      %p119 = scmp.eq.s32.totalorder %s29, 0
      %p120 = por %p118, %p119
      %p121 = scmp.ne.s32.totalorder %s109, %s110
      %p122 = scmp.eq.s32.totalorder %s30, 1
      %p123 = por %p121, %p122
      %p125 = scmp.ne.s32.totalorder %s110, %s124
      %p126 = scmp.eq.s32.totalorder %s30, 0
      %p127 = por %p125, %p126
      %s129 = sadd.s32 %s128, 1
      %p132 = scmp.eq.s32.totalorder %s24, 1
      %p133 = scmp.ne.s32.totalorder %s128, %s130
      %p134 = scmp.eq.s32.totalorder %s24, 0
      %p135 = por %p133, %p134
      %p136 = scmp.ne.s32.totalorder %s128, %s130
      %p137 = scmp.eq.s32.totalorder %s29, 1
      %p138 = por %p136, %p137
      %p139 = scmp.ne.s32.totalorder %s130, %s131
      %p140 = scmp.eq.s32.totalorder %s29, 0
      %p141 = por %p139, %p140
      %p142 = scmp.ne.s32.totalorder %s130, %s131
      %p143 = scmp.eq.s32.totalorder %s30, 1
      %p144 = por %p142, %p143
      %p146 = scmp.ne.s32.totalorder %s131, %s145
      %p147 = scmp.eq.s32.totalorder %s30, 0
      %p148 = por %p146, %p147
      %s150 = sadd.s32 %s149, 1
      %p153 = scmp.eq.s32.totalorder %s24, 1
      %p154 = scmp.ne.s32.totalorder %s149, %s151
      %p155 = scmp.eq.s32.totalorder %s24, 0
      %p156 = por %p154, %p155
      %p157 = scmp.ne.s32.totalorder %s149, %s151
      %p158 = scmp.eq.s32.totalorder %s29, 1
      %p159 = por %p157, %p158
      %p160 = scmp.ne.s32.totalorder %s151, %s152
      %p161 = scmp.eq.s32.totalorder %s29, 0
      %p162 = por %p160, %p161
      %p163 = scmp.ne.s32.totalorder %s151, %s152
      %p164 = scmp.eq.s32.totalorder %s30, 1
      %p165 = por %p163, %p164
      %p167 = scmp.ne.s32.totalorder %s152, %s166
      %p168 = scmp.eq.s32.totalorder %s30, 0
      %p169 = por %p167, %p168
      %s171 = sadd.s32 %s170, 1
      %p174 = scmp.eq.s32.totalorder %s24, 1
      %p175 = scmp.ne.s32.totalorder %s170, %s172
      %p176 = scmp.eq.s32.totalorder %s24, 0
      %p177 = por %p175, %p176
      %p178 = scmp.ne.s32.totalorder %s170, %s172
      %p179 = scmp.eq.s32.totalorder %s29, 1
      %p180 = por %p178, %p179
      %p181 = scmp.ne.s32.totalorder %s172, %s173
      %p182 = scmp.eq.s32.totalorder %s29, 0
      %p183 = por %p181, %p182
      %p184 = scmp.ne.s32.totalorder %s172, %s173
      %p185 = scmp.eq.s32.totalorder %s30, 1
      %p186 = por %p184, %p185
      %p188 = scmp.ne.s32.totalorder %s173, %s187
      %p189 = scmp.eq.s32.totalorder %s30, 0
      %p190 = por %p188, %p189
      %s192 = sadd.s32 %s191, 1
      %p195 = scmp.eq.s32.totalorder %s24, 1
      %p196 = scmp.ne.s32.totalorder %s191, %s193
      %p197 = scmp.eq.s32.totalorder %s24, 0
      %p198 = por %p196, %p197
      %p199 = scmp.ne.s32.totalorder %s191, %s193
      %p200 = scmp.eq.s32.totalorder %s29, 1
      %p201 = por %p199, %p200
      %p202 = scmp.ne.s32.totalorder %s193, %s194
      %p203 = scmp.eq.s32.totalorder %s29, 0
      %p204 = por %p202, %p203
      %p205 = scmp.ne.s32.totalorder %s193, %s194
      %p206 = scmp.eq.s32.totalorder %s30, 1
      %p207 = por %p205, %p206
      %p209 = scmp.ne.s32.totalorder %s194, %s208
      %p210 = scmp.eq.s32.totalorder %s30, 0
      %p211 = por %p209, %p210
      %s213 = sadd.s32 %s212, 1
      %p216 = scmp.eq.s32.totalorder %s24, 1
      %p217 = scmp.ne.s32.totalorder %s212, %s214
      %p218 = scmp.eq.s32.totalorder %s24, 0
      %p219 = por %p217, %p218
      %p220 = scmp.ne.s32.totalorder %s212, %s214
      %p221 = scmp.eq.s32.totalorder %s29, 1
      %p222 = por %p220, %p221
      %p223 = scmp.ne.s32.totalorder %s214, %s215
      %p224 = scmp.eq.s32.totalorder %s29, 0
      %p225 = por %p223, %p224
      %p226 = scmp.ne.s32.totalorder %s214, %s215
      %p227 = scmp.eq.s32.totalorder %s30, 1
      %p228 = por %p226, %p227
      %p230 = scmp.ne.s32.totalorder %s215, %s229
      %p231 = scmp.eq.s32.totalorder %s30, 0
      %p232 = por %p230, %p231
      %s233 = ssub.s32 %s31, %s50
      %s234 = ssub.s32 %s32, %s46
      %s235 = sor.u32 %s233, %s234
      %p236 = scmp.eq.s32.totalorder %s235, 0
      %s238 = sadd.s32 %s237, 1
      %s239 = scalar_select %p236, %s237, %s238
      %p242 = pneg %p236
      %p243 = scmp.eq.s32.totalorder %s24, 1
      %p244 = por %p242, %p243
      %p245 = scmp.ne.s32.totalorder %s237, %s240
      %p246 = scmp.eq.s32.totalorder %s24, 0
      %p247 = por %p245, %p246
      %p248 = scmp.ne.s32.totalorder %s237, %s240
      %p249 = scmp.eq.s32.totalorder %s29, 1
      %p250 = por %p248, %p249
      %p251 = scmp.ne.s32.totalorder %s240, %s241
      %p252 = scmp.eq.s32.totalorder %s29, 0
      %p253 = por %p251, %p252
      %p254 = scmp.ne.s32.totalorder %s240, %s241
      %p255 = scmp.eq.s32.totalorder %s30, 1
      %p256 = por %p254, %p255
      %p258 = scmp.ne.s32.totalorder %s241, %s257
      %p259 = scmp.eq.s32.totalorder %s30, 0
      %p260 = por %p258, %p259
      %p261 = scmp.le.s32.totalorder 1, %s24
      %p262 = scmp.lt.s32.totalorder %s24, 3
      %p263 = pnand %p261, %p262
      %p264 = pneg %p263
      // Predicated region
      $region9: #{tpu_custom_call.1} parent=5 // pred_check
        _
      $region10: #{tpu_custom_call.1} parent=5 // pred_check_branch
        %266 = sbr.rel (%p263) target = $region12
      $region11: #{tpu_custom_call.1} parent=5 // pred_region
        %s267 = ssub.s32 %s24, 1
        // Predicated region
        $region13: #{tpu_custom_call.1} parent=11 // pred_check
          %p268 = pneg %p120
        $region14: #{tpu_custom_call.1} parent=11 // pred_check_branch
          %270 = sbr.rel (%p268) target = $region16
        $region15: #{tpu_custom_call.1} parent=11 // pred_region
          %s272 = ssub.s32 256, 256
          %273 = vsyncadd [#allocation10], %s272
          %s274 = sshll.u32 [#allocation11], 4
          %s275 = int_to_ptr.vmem [resolvable:$true] %s274
          %280 = dma.hbm_to_vmem [thread:$0]  %s2, 256, %s275, [#allocation10], 64, 64, 4
        $region16: #{tpu_custom_call.1} parent=11 // pred_fallthru
          _
        // Predicated region
        $region17: #{tpu_custom_call.1} parent=11 // pred_check
          %p281 = pneg %p141
        $region18: #{tpu_custom_call.1} parent=11 // pred_check_branch
          %283 = sbr.rel (%p281) target = $region20
        $region19: #{tpu_custom_call.1} parent=11 // pred_region
          %s285 = ssub.s32 256, 256
          %286 = vsyncadd [#allocation13], %s285
          %s287 = sshll.u32 [#allocation12], 4
          %s288 = int_to_ptr.vmem [resolvable:$true] %s287
          %293 = dma.hbm_to_vmem [thread:$0]  %s3, 256, %s288, [#allocation13], 64, 64, 4
        $region20: #{tpu_custom_call.1} parent=11 // pred_fallthru
          _
        // Predicated region
        $region21: #{tpu_custom_call.1} parent=11 // pred_check
          %p294 = pneg %p162
        $region22: #{tpu_custom_call.1} parent=11 // pred_check_branch
          %296 = sbr.rel (%p294) target = $region24
        $region23: #{tpu_custom_call.1} parent=11 // pred_region
          %s298 = ssub.s32 256, 256
          %299 = vsyncadd [#allocation13], %s298
          %s300 = sshll.u32 [#allocation14], 4
          %s301 = int_to_ptr.vmem [resolvable:$true] %s300
          %306 = dma.hbm_to_vmem [thread:$0]  %s4, 256, %s301, [#allocation13], 64, 64, 4
        $region24: #{tpu_custom_call.1} parent=11 // pred_fallthru
          _
        // Predicated region
        $region25: #{tpu_custom_call.1} parent=11 // pred_check
          %p307 = pneg %p183
        $region26: #{tpu_custom_call.1} parent=11 // pred_check_branch
          %309 = sbr.rel (%p307) target = $region28
        $region27: #{tpu_custom_call.1} parent=11 // pred_region
          _
        $region28: #{tpu_custom_call.1} parent=11 // pred_fallthru
          _
        // Predicated region
        $region29: #{tpu_custom_call.1} parent=11 // pred_check
          %p310 = pneg %p204
        $region30: #{tpu_custom_call.1} parent=11 // pred_check_branch
          %312 = sbr.rel (%p310) target = $region32
        $region31: #{tpu_custom_call.1} parent=11 // pred_region
          _
        $region32: #{tpu_custom_call.1} parent=11 // pred_fallthru
          _
        // Predicated region
        $region33: #{tpu_custom_call.1} parent=11 // pred_check
          %p313 = pneg %p225
        $region34: #{tpu_custom_call.1} parent=11 // pred_check_branch
          %315 = sbr.rel (%p313) target = $region36
        $region35: #{tpu_custom_call.1} parent=11 // pred_region
          _
        $region36: #{tpu_custom_call.1} parent=11 // pred_fallthru
          _
      $region12: #{tpu_custom_call.1} parent=5 // pred_fallthru
        _
      %p316 = scmp.lt.s32.totalorder %s24, 2
      // Predicated region
      $region37: #{tpu_custom_call.1} parent=5 // pred_check
        %p317 = pneg %p316
      $region38: #{tpu_custom_call.1} parent=5 // pred_check_branch
        %319 = sbr.rel (%p317) target = $region40
      $region39: #{tpu_custom_call.1} parent=5 // pred_region
        // Predicated region
        $region41: #{tpu_custom_call.1} parent=39 // pred_check
          %p320 = pneg %p65
        $region42: #{tpu_custom_call.1} parent=39 // pred_check_branch
          %322 = sbr.rel (%p320) target = $region44
        $region43: #{tpu_custom_call.1} parent=39 // pred_region
          %s323 = sand.u32 %s55, 1
          %s324 = scalar_lea.sflag [#allocation7], %s323
          %s325 = sand.u32 %s55, 1
          %s326 = smul.addr %s325, 8
          %s327 = scalar_lea.vmem [#allocation6], %s326
          %s329 = ssub.s32 128, 128
          %330 = vsyncadd %s324, %s329
          %s331 = sadd.s32 %s32, %s31
          %s332 = smul.addr %s331, 128
          %s333 = scalar_lea.hbm %s0, %s332
          %s335 = sshll.u32 %s327, 4
          %s336 = int_to_ptr.vmem [resolvable:$true] %s335
          %338 = dma.hbm_to_vmem [thread:$0]  %s333, 128, %s336, %s324
        $region44: #{tpu_custom_call.1} parent=39 // pred_fallthru
          _
        // Predicated region
        $region45: #{tpu_custom_call.1} parent=39 // pred_check
          %p339 = pneg %p93
        $region46: #{tpu_custom_call.1} parent=39 // pred_check_branch
          %341 = sbr.rel (%p339) target = $region48
        $region47: #{tpu_custom_call.1} parent=39 // pred_region
          %s342 = sand.u32 %s24, 1
          %s343 = scalar_lea.sflag [#allocation10], %s342
          %s344 = sand.u32 %s83, 1
          %s345 = smul.addr %s344, 8
          %s346 = scalar_lea.vmem [#allocation9], %s345
          %s348 = ssub.s32 128, 128
          %349 = vsyncadd %s343, %s348
          %s350 = sadd.s32 %s33, %s31
          %s351 = smul.addr %s350, 128
          %s352 = scalar_lea.hbm %s1, %s351
          %s354 = sshll.u32 %s346, 4
          %s355 = int_to_ptr.vmem [resolvable:$true] %s354
          %357 = dma.hbm_to_vmem [thread:$0]  %s352, 128, %s355, %s343
        $region48: #{tpu_custom_call.1} parent=39 // pred_fallthru
          _
      $region40: #{tpu_custom_call.1} parent=5 // pred_fallthru
        _
      %p358 = scmp.le.s32.totalorder 1, %s24
      %p359 = scmp.lt.s32.totalorder %s24, 3
      %p360 = pnand %p358, %p359
      %p361 = pneg %p360
      // Predicated region
      $region49: #{tpu_custom_call.1} parent=5 // pred_check
        _
      $region50: #{tpu_custom_call.1} parent=5 // pred_check_branch
        %363 = sbr.rel (%p360) target = $region52
      $region51: #{tpu_custom_call.1} parent=5 // pred_region
        %s364 = ssub.s32 %s24, 1
        %s365 = sand.u32 %s58, 1
        %s366 = scalar_lea.sflag [#allocation7], %s365
        %s367 = sand.u32 %s58, 1
        %s368 = smul.addr %s367, 8
        %s369 = scalar_lea.vmem [#allocation6], %s368
        // Predicated region
        $region53: #{tpu_custom_call.1} parent=51 // pred_check
          %p370 = pneg %p71
        $region54: #{tpu_custom_call.1} parent=51 // pred_check_branch
          %372 = sbr.rel (%p370) target = $region56
        $region55: #{tpu_custom_call.1} parent=51 // pred_region
          %373 = dma.done %s366, 128
        $region56: #{tpu_custom_call.1} parent=51 // pred_fallthru
          _
        %s374 = sand.u32 %s29, 1
        %s375 = scalar_lea.sflag [#allocation10], %s374
        %s376 = sand.u32 %s86, 1
        %s377 = smul.addr %s376, 8
        %s378 = scalar_lea.vmem [#allocation9], %s377
        // Predicated region
        $region57: #{tpu_custom_call.1} parent=51 // pred_check
          %p379 = pneg %p99
        $region58: #{tpu_custom_call.1} parent=51 // pred_check_branch
          %381 = sbr.rel (%p379) target = $region60
        $region59: #{tpu_custom_call.1} parent=51 // pred_region
          %382 = dma.done %s375, 128
        $region60: #{tpu_custom_call.1} parent=51 // pred_fallthru
          _
        // Predicated region
        $region61: #{tpu_custom_call.1} parent=51 // pred_check
          %p383 = pneg %p120
        $region62: #{tpu_custom_call.1} parent=51 // pred_check_branch
          %385 = sbr.rel (%p383) target = $region64
        $region63: #{tpu_custom_call.1} parent=51 // pred_region
          %386 = dma.done [#allocation10], 256
        $region64: #{tpu_custom_call.1} parent=51 // pred_fallthru
          _
        // Predicated region
        $region65: #{tpu_custom_call.1} parent=51 // pred_check
          %p387 = pneg %p141
        $region66: #{tpu_custom_call.1} parent=51 // pred_check_branch
          %389 = sbr.rel (%p387) target = $region68
        $region67: #{tpu_custom_call.1} parent=51 // pred_region
          %390 = dma.done [#allocation13], 256
        $region68: #{tpu_custom_call.1} parent=51 // pred_fallthru
          _
        // Predicated region
        $region69: #{tpu_custom_call.1} parent=51 // pred_check
          %p391 = pneg %p162
        $region70: #{tpu_custom_call.1} parent=51 // pred_check_branch
          %393 = sbr.rel (%p391) target = $region72
        $region71: #{tpu_custom_call.1} parent=51 // pred_region
          %394 = dma.done [#allocation13], 256
        $region72: #{tpu_custom_call.1} parent=51 // pred_fallthru
          _
        %s395 = sand.u32 %s58, 1
        %s396 = scalar_lea.sflag [#allocation7], %s395
        %s397 = sand.u32 %s58, 1
        %s398 = smul.addr %s397, 8
        %s399 = scalar_lea.vmem [#allocation6], %s398
        %p400 = pneg %p71
        %p401 = pneg %p68
        %s402 = sand.u32 %s29, 1
        %s403 = scalar_lea.sflag [#allocation10], %s402
        %s404 = sand.u32 %s86, 1
        %s405 = smul.addr %s404, 8
        %s406 = scalar_lea.vmem [#allocation9], %s405
        %p407 = pneg %p99
        %p408 = pneg %p96
        %p409 = pneg %p120
        %p410 = pneg %p117
        %p411 = pneg %p141
        %p412 = pneg %p138
        %p413 = pneg %p162
        %p414 = pneg %p159
        %p415 = pneg %p183
        %p416 = pneg %p180
        %p417 = pneg %p204
        %p418 = pneg %p201
        %p419 = pneg %p225
        %p420 = pneg %p222
        %p421 = pneg %p253
        %p422 = pneg %p250
        %s423 = sand.u32 %s240, 1
        %s424 = scalar_lea.sflag [#allocation8], %s423
        %s425 = sand.u32 %s240, 1
        %s426 = smul.addr %s425, 8
        %s427 = scalar_lea.vmem [#allocation15], %s426
        %p429 = scmp.eq.s32.totalorder %s36, 0
        // Predicated region
        $region73: #{tpu_custom_call.1} parent=51 // pred_check
          %p430 = pneg %p429
        $region74: #{tpu_custom_call.1} parent=51 // pred_check_branch
          %432 = sbr.rel (%p430) target = $region76
        $region75: #{tpu_custom_call.1} parent=51 // pred_region
          %v433 = vld [vmem:[%s369] sm:$0xff]
          %v434 = vpack.c.bf16 %v433, %v433
          %v435 = vld [vmem:[#allocation11] sm:$0xf]
          %v436 = vld [vmem:[#allocation11 + $0x4] sm:$0xf]
          %v437 = vld [vmem:[#allocation11 + $0x8] sm:$0xf]
          %v438 = vld [vmem:[#allocation11 + $0xc] sm:$0xf]
          %v439 = vld [vmem:[%s5] sm:$0x1]
          %v441 = vlaneseq
          %v442 = vshrl.u32 %v441, 7
          %v443 = vsub.s32 0, %v442
          %v444 = vrot.slane %v439, %v443
          %v450 = vunpack.c.l.b16 %v435
          %v451 = vunpack.c.l.b16 %v436
          %v452 = vunpack.c.l.b16 %v437
          %v453 = vunpack.c.l.b16 %v438
          %v454 = vpack.c.b16 %v451, %v450
          %v455 = vpack.c.b16 %v453, %v452
          %vm458 = vcmask 261120
          %v460 = vsel %vm458, %v434, 0
          %462 = vmatprep.subr.bf16.mxu0 0
          %463 = vmatpush1.bf16.msra.mxu0 %v454
          %464 = vmatprep.subr.bf16.mxu0 0
          %465 = vmatpush1.bf16.msra.mxu0 %v455
          %466 = vmatprep.subr.bf16.mxu0 0
          %467 = vmatpush1.bf16.msra.mxu0 0
          %468 = vmatprep.subr.bf16.mxu0 0
          %469 = vmatpush1.bf16.msra.mxu0 0
          %470 = vmatprep.subr.bf16.mxu0 0
          %471 = vmatpush1.bf16.msra.mxu0 0
          %472 = vmatprep.subr.bf16.mxu0 0
          %473 = vmatpush1.bf16.msra.mxu0 0
          %474 = vmatprep.subr.bf16.mxu0 0
          %475 = vmatpush1.bf16.msra.mxu0 0
          %476 = vmatprep.subr.bf16.mxu0 0
          %477 = vmatpush1.bf16.msra.mxu0 0
          %478 = vmatprep.subr.bf16.mxu0 0
          %479 = vmatpush1.bf16.msra.mxu0 0
          %480 = vmatprep.subr.bf16.mxu0 0
          %481 = vmatpush1.bf16.msra.mxu0 0
          %482 = vmatprep.subr.bf16.mxu0 0
          %483 = vmatpush1.bf16.msra.mxu0 0
          %484 = vmatprep.subr.bf16.mxu0 0
          %485 = vmatpush1.bf16.msra.mxu0 0
          %486 = vmatprep.subr.bf16.mxu0 0
          %487 = vmatpush1.bf16.msra.mxu0 0
          %488 = vmatprep.subr.bf16.mxu0 0
          %489 = vmatpush1.bf16.msra.mxu0 0
          %490 = vmatprep.subr.bf16.mxu0 0
          %491 = vmatpush1.bf16.msra.mxu0 0
          %492 = vmatprep.subr.bf16.mxu0 0
          %493 = vmatpush1.bf16.msra.mxu0 0
          %494 = vmatprep.mubr.bf16.mxu0 0
          %495 = vmatmul.mubr.bf16.gmra.mrb[0].mxu0 %v460
          %v496 = vpop.f32.mrb[0].mxu0
          %v497 = vadd.f32 %v444, %v496
          %v498 = vpop.f32.mrb[0].mxu0
          %v499 = vpop.f32.mrb[0].mxu0
          %v500 = vpop.f32.mrb[0].mxu0
          %501 = vdwg.mxu0
          %v502 = vpack.c.bf16 %v497, %v497
          %vm503 = vcmask 257024
          %504 = vst.msk [vmem:[#allocation2] sm:$0xf] %vm503, %v502
          %vm505 = vcmask 7168
          %506 = vst.msk [vmem:[#allocation3] sm:$0xff] %vm505, -inf
          %507 = vst.msk [vmem:[#allocation4] sm:$0xff] %vm505, 0.0
          %508 = vst.msk [vmem:[#allocation5] sm:$0xff] %vm458, 0.0
        $region76: #{tpu_custom_call.1} parent=51 // pred_fallthru
          _
        %v509 = vld [vmem:[%s378] sm:$0xff]
        %v510 = vpack.c.bf16 %v509, %v509
        %v511 = vld [vmem:[#allocation12] sm:$0xf]
        %v512 = vld [vmem:[#allocation12 + $0x4] sm:$0xf]
        %v513 = vld [vmem:[#allocation12 + $0x8] sm:$0xf]
        %v514 = vld [vmem:[#allocation12 + $0xc] sm:$0xf]
        %v515 = vld [vmem:[%s6] sm:$0x1]
        %v517 = vlaneseq
        %v518 = vshrl.u32 %v517, 7
        %v519 = vsub.s32 0, %v518
        %v520 = vrot.slane %v515, %v519
        %v526 = vunpack.c.l.b16 %v511
        %v527 = vunpack.c.l.b16 %v512
        %v528 = vunpack.c.l.b16 %v513
        %v529 = vunpack.c.l.b16 %v514
        %v530 = vpack.c.b16 %v527, %v526
        %v531 = vpack.c.b16 %v529, %v528
        %vm534 = vcmask 261120
        %v536 = vsel %vm534, %v510, 0
        %538 = vmatprep.subr.bf16.mxu0 0
        %539 = vmatpush1.bf16.msra.mxu0 %v530
        %540 = vmatprep.subr.bf16.mxu0 0
        %541 = vmatpush1.bf16.msra.mxu0 %v531
        %542 = vmatprep.subr.bf16.mxu0 0
        %543 = vmatpush1.bf16.msra.mxu0 0
        %544 = vmatprep.subr.bf16.mxu0 0
        %545 = vmatpush1.bf16.msra.mxu0 0
        %546 = vmatprep.subr.bf16.mxu0 0
        %547 = vmatpush1.bf16.msra.mxu0 0
        %548 = vmatprep.subr.bf16.mxu0 0
        %549 = vmatpush1.bf16.msra.mxu0 0
        %550 = vmatprep.subr.bf16.mxu0 0
        %551 = vmatpush1.bf16.msra.mxu0 0
        %552 = vmatprep.subr.bf16.mxu0 0
        %553 = vmatpush1.bf16.msra.mxu0 0
        %554 = vmatprep.subr.bf16.mxu0 0
        %555 = vmatpush1.bf16.msra.mxu0 0
        %556 = vmatprep.subr.bf16.mxu0 0
        %557 = vmatpush1.bf16.msra.mxu0 0
        %558 = vmatprep.subr.bf16.mxu0 0
        %559 = vmatpush1.bf16.msra.mxu0 0
        %560 = vmatprep.subr.bf16.mxu0 0
        %561 = vmatpush1.bf16.msra.mxu0 0
        %562 = vmatprep.subr.bf16.mxu0 0
        %563 = vmatpush1.bf16.msra.mxu0 0
        %564 = vmatprep.subr.bf16.mxu0 0
        %565 = vmatpush1.bf16.msra.mxu0 0
        %566 = vmatprep.subr.bf16.mxu0 0
        %567 = vmatpush1.bf16.msra.mxu0 0
        %568 = vmatprep.subr.bf16.mxu0 0
        %569 = vmatpush1.bf16.msra.mxu0 0
        %570 = vmatprep.mubr.bf16.mxu0 0
        %571 = vmatmul.mubr.bf16.gmra.mrb[0].mxu0 %v536
        %v572 = vpop.f32.mrb[0].mxu0
        %v573 = vadd.f32 %v520, %v572
        %v574 = vpop.f32.mrb[0].mxu0
        %v575 = vpop.f32.mrb[0].mxu0
        %v576 = vpop.f32.mrb[0].mxu0
        %577 = vdwg.mxu0
        %v578 = vpack.c.bf16 %v573, %v573
        %v579 = vld [vmem:[#allocation14] sm:$0xf]
        %v580 = vld [vmem:[#allocation14 + $0x4] sm:$0xf]
        %v581 = vld [vmem:[#allocation14 + $0x8] sm:$0xf]
        %v582 = vld [vmem:[#allocation14 + $0xc] sm:$0xf]
        %v583 = vld [vmem:[%s7] sm:$0x1]
        %v585 = vlaneseq
        %v586 = vshrl.u32 %v585, 7
        %v587 = vsub.s32 0, %v586
        %v588 = vrot.slane %v583, %v587
        %v594 = vunpack.c.l.b16 %v579
        %v595 = vunpack.c.l.b16 %v580
        %v596 = vunpack.c.l.b16 %v581
        %v597 = vunpack.c.l.b16 %v582
        %v598 = vpack.c.b16 %v595, %v594
        %v599 = vpack.c.b16 %v597, %v596
        %602 = vmatprep.subr.bf16.mxu0 0
        %603 = vmatpush1.bf16.msra.mxu0 %v598
        %604 = vmatprep.subr.bf16.mxu0 0
        %605 = vmatpush1.bf16.msra.mxu0 %v599
        %606 = vmatprep.subr.bf16.mxu0 0
        %607 = vmatpush1.bf16.msra.mxu0 0
        %608 = vmatprep.subr.bf16.mxu0 0
        %609 = vmatpush1.bf16.msra.mxu0 0
        %610 = vmatprep.subr.bf16.mxu0 0
        %611 = vmatpush1.bf16.msra.mxu0 0
        %612 = vmatprep.subr.bf16.mxu0 0
        %613 = vmatpush1.bf16.msra.mxu0 0
        %614 = vmatprep.subr.bf16.mxu0 0
        %615 = vmatpush1.bf16.msra.mxu0 0
        %616 = vmatprep.subr.bf16.mxu0 0
        %617 = vmatpush1.bf16.msra.mxu0 0
        %618 = vmatprep.subr.bf16.mxu0 0
        %619 = vmatpush1.bf16.msra.mxu0 0
        %620 = vmatprep.subr.bf16.mxu0 0
        %621 = vmatpush1.bf16.msra.mxu0 0
        %622 = vmatprep.subr.bf16.mxu0 0
        %623 = vmatpush1.bf16.msra.mxu0 0
        %624 = vmatprep.subr.bf16.mxu0 0
        %625 = vmatpush1.bf16.msra.mxu0 0
        %626 = vmatprep.subr.bf16.mxu0 0
        %627 = vmatpush1.bf16.msra.mxu0 0
        %628 = vmatprep.subr.bf16.mxu0 0
        %629 = vmatpush1.bf16.msra.mxu0 0
        %630 = vmatprep.subr.bf16.mxu0 0
        %631 = vmatpush1.bf16.msra.mxu0 0
        %632 = vmatprep.subr.bf16.mxu0 0
        %633 = vmatpush1.bf16.msra.mxu0 0
        %634 = vmatprep.mubr.bf16.mxu0 0
        %635 = vmatmul.mubr.bf16.gmra.mrb[0].mxu0 %v536
        %v636 = vpop.f32.mrb[0].mxu0
        %v637 = vadd.f32 %v588, %v636
        %v638 = vpop.f32.mrb[0].mxu0
        %v639 = vpop.f32.mrb[0].mxu0
        %v640 = vpop.f32.mrb[0].mxu0
        %641 = vdwg.mxu0
        %v642 = vpack.c.bf16 %v637, %v637
        %v643 = vld [vmem:[#allocation2] sm:$0xf]
        %v645 = vsel %vm534, %v643, 0
        %v648 = vsel %vm534, %v578, 0
        %650 = vmatprep.subr.bf16.mxu0 0
        %651 = vmatpush1.bf16.xpose.msra.mxu0 %v648
        %652 = vmatprep.subr.bf16.mxu0 0
        %653 = vmatpush1.bf16.xpose.msra.mxu0 0
        %654 = vmatprep.subr.bf16.mxu0 0
        %655 = vmatpush1.bf16.xpose.msra.mxu0 0
        %656 = vmatprep.subr.bf16.mxu0 0
        %657 = vmatpush1.bf16.xpose.msra.mxu0 0
        %658 = vmatprep.subr.bf16.mxu0 0
        %659 = vmatpush1.bf16.xpose.msra.mxu0 0
        %660 = vmatprep.subr.bf16.mxu0 0
        %661 = vmatpush1.bf16.xpose.msra.mxu0 0
        %662 = vmatprep.subr.bf16.mxu0 0
        %663 = vmatpush1.bf16.xpose.msra.mxu0 0
        %664 = vmatprep.subr.bf16.mxu0 0
        %665 = vmatpush1.bf16.xpose.msra.mxu0 0
        %666 = vmatprep.subr.bf16.mxu0 0
        %667 = vmatpush1.bf16.xpose.msra.mxu0 0
        %668 = vmatprep.subr.bf16.mxu0 0
        %669 = vmatpush1.bf16.xpose.msra.mxu0 0
        %670 = vmatprep.subr.bf16.mxu0 0
        %671 = vmatpush1.bf16.xpose.msra.mxu0 0
        %672 = vmatprep.subr.bf16.mxu0 0
        %673 = vmatpush1.bf16.xpose.msra.mxu0 0
        %674 = vmatprep.subr.bf16.mxu0 0
        %675 = vmatpush1.bf16.xpose.msra.mxu0 0
        %676 = vmatprep.subr.bf16.mxu0 0
        %677 = vmatpush1.bf16.xpose.msra.mxu0 0
        %678 = vmatprep.subr.bf16.mxu0 0
        %679 = vmatpush1.bf16.xpose.msra.mxu0 0
        %680 = vmatprep.subr.bf16.mxu0 0
        %681 = vmatpush1.bf16.xpose.msra.mxu0 0
        %682 = vmatprep.mubr.bf16.mxu0 0
        %683 = vmatmul.mubr.bf16.gmra.mrb[0].mxu0 %v645
        %v684 = vpop.f32.mrb[0].mxu0
        %v685 = vadd.f32 0.0, %v684
        %v686 = vpop.f32.mrb[0].mxu0
        %v687 = vpop.f32.mrb[0].mxu0
        %v688 = vpop.f32.mrb[0].mxu0
        %689 = vdwg.mxu0
        %v690 = vld [vmem:[#allocation3] sm:$0xff]
        %vm691 = vcmask 64512
        %v692 = vsel %vm691, %v685, -inf
        %693 = vmax.xlane.f32.xlu0 %v692
        %v694 = vpop.xlane.xlu0 %693
        %v695 = vmax.f32 %v690, %v694
        %v696 = vsub.f32 %v690, %v695
        %v697 = vmul.f32 %v696, 1.442695
        %v698 = vpow.pop %v697
        %700 = vset.pattern.permute.xlu0 0
        %701 = vperm.xlu0 %700, %v695
        %v702 = vpop.permute.xlu0 %701
        %v704 = vsub.f32 %v685, %v702
        %v705 = vmul.f32 %v704, 1.442695
        %v706 = vpow.pop %v705
        %v707 = vld [vmem:[#allocation4] sm:$0xff]
        %v708 = vmul.f32 %v698, %v707
        %v709 = vsel %vm691, %v706, 0.0
        %710 = vadd.xlane.f32.xlu0 %v709
        %v711 = vpop.xlane.xlu0 %710
        %v712 = vadd.f32 %v708, %v711
        %vm713 = vcmask 7168
        %714 = vst.msk [vmem:[#allocation4] sm:$0xff] %vm713, %v712
        %v715 = vld [vmem:[#allocation5] sm:$0xff]
        %717 = vset.pattern.permute.xlu0 0
        %718 = vperm.xlu0 %717, %v698
        %v719 = vpop.permute.xlu0 %718
        %v721 = vmul.f32 %v719, %v715
        %v722 = vpack.c.bf16 %v706, %v706
        %v724 = vsel %vm691, %v722, 0
        %vm726 = vcmask 1043456
        %v728 = vsel %vm726, %v642, 0
        %730 = vmatprep.subr.bf16.mxu0 0
        %731 = vmatpush1.bf16.msra.mxu0 %v728
        %732 = vmatprep.subr.bf16.mxu0 0
        %733 = vmatpush1.bf16.msra.mxu0 0
        %734 = vmatprep.subr.bf16.mxu0 0
        %735 = vmatpush1.bf16.msra.mxu0 0
        %736 = vmatprep.subr.bf16.mxu0 0
        %737 = vmatpush1.bf16.msra.mxu0 0
        %738 = vmatprep.subr.bf16.mxu0 0
        %739 = vmatpush1.bf16.msra.mxu0 0
        %740 = vmatprep.subr.bf16.mxu0 0
        %741 = vmatpush1.bf16.msra.mxu0 0
        %742 = vmatprep.subr.bf16.mxu0 0
        %743 = vmatpush1.bf16.msra.mxu0 0
        %744 = vmatprep.subr.bf16.mxu0 0
        %745 = vmatpush1.bf16.msra.mxu0 0
        %746 = vmatprep.subr.bf16.mxu0 0
        %747 = vmatpush1.bf16.msra.mxu0 0
        %748 = vmatprep.subr.bf16.mxu0 0
        %749 = vmatpush1.bf16.msra.mxu0 0
        %750 = vmatprep.subr.bf16.mxu0 0
        %751 = vmatpush1.bf16.msra.mxu0 0
        %752 = vmatprep.subr.bf16.mxu0 0
        %753 = vmatpush1.bf16.msra.mxu0 0
        %754 = vmatprep.subr.bf16.mxu0 0
        %755 = vmatpush1.bf16.msra.mxu0 0
        %756 = vmatprep.subr.bf16.mxu0 0
        %757 = vmatpush1.bf16.msra.mxu0 0
        %758 = vmatprep.subr.bf16.mxu0 0
        %759 = vmatpush1.bf16.msra.mxu0 0
        %760 = vmatprep.subr.bf16.mxu0 0
        %761 = vmatpush1.bf16.msra.mxu0 0
        %762 = vmatprep.mubr.bf16.mxu0 0
        %763 = vmatmul.mubr.bf16.gmra.mrb[0].mxu0 %v724
        %v764 = vpop.f32.mrb[0].mxu0
        %v765 = vadd.f32 0.0, %v764
        %v766 = vpop.f32.mrb[0].mxu0
        %v767 = vpop.f32.mrb[0].mxu0
        %v768 = vpop.f32.mrb[0].mxu0
        %769 = vdwg.mxu0
        %v770 = vadd.f32 %v721, %v765
        %771 = vst.msk [vmem:[#allocation5] sm:$0xff] %vm534, %v770
        %772 = vst.msk [vmem:[#allocation3] sm:$0xff] %vm713, %v695
        // Predicated region
        $region77: #{tpu_custom_call.1} parent=51 // pred_check
          %p773 = pneg %p429
        $region78: #{tpu_custom_call.1} parent=51 // pred_check_branch
          %775 = sbr.rel (%p773) target = $region80
        $region79: #{tpu_custom_call.1} parent=51 // pred_region
          %v776 = vld [vmem:[#allocation4] sm:$0xff]
          %v777 = vrcp.pop %v776
          %v778 = vld [vmem:[#allocation5] sm:$0xff]
          %780 = vset.pattern.permute.xlu0 0
          %781 = vperm.xlu0 %780, %v777
          %v782 = vpop.permute.xlu0 %781
          %v784 = vmul.f32 %v778, %v782
          %785 = vst.msk [vmem:[%s427] sm:$0xff] %vm534, %v784
        $region80: #{tpu_custom_call.1} parent=51 // pred_fallthru
          _
        %s786 = sand.u32 %s240, 1
        %s787 = scalar_lea.sflag [#allocation8], %s786
        %s788 = sand.u32 %s240, 1
        %s789 = smul.addr %s788, 8
        %s790 = scalar_lea.vmem [#allocation15], %s789
        // Predicated region
        $region81: #{tpu_custom_call.1} parent=51 // pred_check
          %p791 = pneg %p250
        $region82: #{tpu_custom_call.1} parent=51 // pred_check_branch
          %793 = sbr.rel (%p791) target = $region84
        $region83: #{tpu_custom_call.1} parent=51 // pred_region
          %s795 = ssub.s32 128, 128
          %796 = vsyncadd %s787, %s795
          %s797 = sadd.s32 %s35, %s34
          %s798 = smul.addr %s797, 128
          %s799 = scalar_lea.hbm %s8, %s798
          %s801 = sshll.u32 %s790, 4
          %s802 = int_to_ptr.vmem [resolvable:$true] %s801
          %804 = dma.vmem_to_hbm [thread:$0]  %s802, 128, %s799, %s787
        $region84: #{tpu_custom_call.1} parent=51 // pred_fallthru
          _
      $region52: #{tpu_custom_call.1} parent=5 // pred_fallthru
        _
      %p805 = scmp.le.s32.totalorder 2, %s24
      // Predicated region
      $region85: #{tpu_custom_call.1} parent=5 // pred_check
        %p806 = pneg %p805
      $region86: #{tpu_custom_call.1} parent=5 // pred_check_branch
        %808 = sbr.rel (%p806) target = $region88
      $region87: #{tpu_custom_call.1} parent=5 // pred_region
        %s809 = ssub.s32 %s24, 2
        // Predicated region
        $region89: #{tpu_custom_call.1} parent=87 // pred_check
          %p810 = pneg %p256
        $region90: #{tpu_custom_call.1} parent=87 // pred_check_branch
          %812 = sbr.rel (%p810) target = $region92
        $region91: #{tpu_custom_call.1} parent=87 // pred_region
          %s813 = sand.u32 %s241, 1
          %s814 = scalar_lea.sflag [#allocation8], %s813
          %s815 = sand.u32 %s241, 1
          %s816 = smul.addr %s815, 8
          %s817 = scalar_lea.vmem [#allocation15], %s816
          %818 = dma.done %s814, 128
        $region92: #{tpu_custom_call.1} parent=87 // pred_fallthru
          _
      $region88: #{tpu_custom_call.1} parent=5 // pred_fallthru
        _
    $region6: #{tpu_custom_call.1} parent=1 // loop_footer
      %s28 = sadd.s32 1, %s24
    $region7: #{tpu_custom_call.1} parent=1 // loop_footer_branch
      %23 = sbr.rel target = $region3
    $region8: #{tpu_custom_call.1} parent=1 // loop_exit
      _
    %819 = vsyncpa [#allocation7], 1
    %s820 = scalar_lea.sflag [#allocation7], 1
    %821 = vsyncpa %s820, 1
    %822 = vsyncpa [#allocation10], 1
    %s823 = scalar_lea.sflag [#allocation10], 1
    %824 = vsyncpa %s823, 1
    %825 = vsyncpa [#allocation13], 1
    %826 = vsyncpa [#allocation8], 1
    %s827 = scalar_lea.sflag [#allocation8], 1
    %828 = vsyncpa %s827, 1

</llo_original>
